<compile_context>
chip_gen: v5e
topology: v5e:2x2
jax: 0.10.0
libtpu: 0.0.40
codegen_flags: <defaults>
</compile_context>

<pallas_src>
import jax
import jax.numpy as jnp
from jax import lax
from jax.experimental import pallas as pl
from jax.experimental.pallas import tpu as pltpu


def _round_up(x, m):
    return ((x + m - 1) // m) * m


def _make_kernel(bf16_epilogue):
    # bf16 epilogue halves the VPU work on v6e/v7x (bf16 VALU); keep f32 on
    # v5e or when tighter numerics vs. the f32 reference are desired.
    act_dtype = jnp.bfloat16 if bf16_epilogue else jnp.float32

    def kernel(z_ref, w1_ref, b1_ref, w2_ref, b2_ref, w3_ref, bn_ref, out_ref):
        """One batch tile of the discriminator MLP.

        z_ref  : [TB, z_dim] f32   batch tile (cast to bf16 in-kernel)
        w1_ref : [z_dim, H]  bf16  VMEM-resident across grid steps
        b1_ref : [1, H]      f32
        w2_ref : [H, H]      bf16  VMEM-resident across grid steps
        b2_ref : [1, H]      f32
        w3_ref : [8, H]      bf16  final-layer weight row, zero-padded to 8 rows
        bn_ref : [1, TB]     f32   b3 + 1e-7*N(0,1), lane-dense over the batch
        out_ref: [1, TB]     f32   lane-dense predictions
        """
        # In-kernel f32 -> bf16 cast of the z tile (tiny VPU cost, saves a
        # wrapper cast op + extra HBM pass).
        z = z_ref[...].astype(jnp.bfloat16)

        # Layer 1: MXU matmul, bf16 operands, f32 accumulation.
        h = jnp.dot(z, w1_ref[...], preferred_element_type=jnp.float32)
        h = h.astype(act_dtype) + b1_ref[...].astype(act_dtype)
        h = jnp.maximum(h, 0.2 * h)                      # LeakyReLU(0.2)

        # Layer 2: MXU matmul.
        h = jnp.dot(h.astype(jnp.bfloat16), w2_ref[...],
                    preferred_element_type=jnp.float32)
        h = h.astype(act_dtype) + b2_ref[...].astype(act_dtype)
        h = jnp.maximum(h, 0.2 * h)                      # LeakyReLU(0.2)

        # Layer 3 (out_features == 1): w3 @ h^T on the MXU via transposed-RHS
        # dimension numbers -> [8, TB], lane-dense over the batch.  Row 0 holds
        # the real output (rows 1..7 of w3 are zero padding).
        p = lax.dot_general(w3_ref[...], h.astype(jnp.bfloat16),
                            dimension_numbers=(((1,), (1,)), ((), ())),
                            preferred_element_type=jnp.float32)
        # preds + (b3 + eps), eps ~ 1e-7 * N(0,1); lane-dense store.
        out_ref[...] = p[0:1, :] + bn_ref[...]

    return kernel


def discriminator_forward(z, params, noise, *, batch_tile=1024,
                          bf16_epilogue=False):
    """z: [B, z_dim] f32, params: dict (f32), noise: [B, 1] f32 (1e-7*N(0,1))."""
    B, z_dim = z.shape
    H = params["w1"].shape[1]

    # ---- Batch tiling -------------------------------------------------------
    # Large tiles amortize per-grid-step overhead; TB is a multiple of 8.
    TB = min(batch_tile, _round_up(B, 8))
    # Ensure >= 2 grid steps whenever the batch allows it, so the "parallel"
    # grid axis can shard across both v7x TensorCores.
    if _round_up(B, 8) // TB < 2 and B > 16:
        align = 128 if B >= 256 else 8
        TB = max(align, _round_up((B + 1) // 2, align))
    Bp = _round_up(B, TB)
    n_tiles = Bp // TB

    if Bp != B:
        z = jnp.pad(z, ((0, Bp - B), (0, 0)))
        noise = jnp.pad(noise, ((0, Bp - B), (0, 0)))

    # ---- Operand prep (weights bf16 for the MXU; bias math in f32) ----------
    z = z.astype(jnp.float32)                    # bf16 cast happens in-kernel
    w1 = params["w1"].astype(jnp.bfloat16)
    w2 = params["w2"].astype(jnp.bfloat16)
    b1 = params["b1"].reshape(1, H).astype(jnp.float32)
    b2 = params["b2"].reshape(1, H).astype(jnp.float32)
    # Final-layer weight as a zero-padded, sublane-aligned [8, H] row block.
    w3 = jnp.pad(params["w3"].reshape(1, H).astype(jnp.bfloat16),
                 ((0, 7), (0, 0)))
    # Fold b3 into the noise and lay it out lane-dense: (n_tiles, 1, TB).
    bias_noise = (noise.reshape(Bp) + params["b3"].reshape(())).astype(jnp.float32)
    bias_noise = bias_noise.reshape(n_tiles, 1, TB)

    kernel = _make_kernel(bf16_epilogue)

    flops = 2 * Bp * (z_dim * H + H * H + H) + 4 * Bp * H
    bytes_accessed = int(z.size * 4 + w1.size * 2 + w2.size * 2 + w3.size * 2
                         + (b1.size + b2.size) * 4 + bias_noise.size * 4 + Bp * 4)

    out = pl.pallas_call(
        kernel,
        out_shape=jax.ShapeDtypeStruct((n_tiles, 1, TB), jnp.float32),
        grid_spec=pltpu.PrefetchScalarGridSpec(
            num_scalar_prefetch=0,
            grid=(n_tiles,),
            in_specs=[
                pl.BlockSpec((TB, z_dim), lambda i: (i, 0)),       # z batch tile
                pl.BlockSpec((z_dim, H), lambda i: (0, 0)),        # w1 (resident)
                pl.BlockSpec((1, H), lambda i: (0, 0)),            # b1 (resident)
                pl.BlockSpec((H, H), lambda i: (0, 0)),            # w2 (resident)
                pl.BlockSpec((1, H), lambda i: (0, 0)),            # b2 (resident)
                pl.BlockSpec((8, H), lambda i: (0, 0)),            # w3 (resident)
                pl.BlockSpec((None, 1, TB), lambda i: (i, 0, 0)),  # b3+noise tile
            ],
            out_specs=pl.BlockSpec((None, 1, TB), lambda i: (i, 0, 0)),
        ),
        compiler_params=pltpu.CompilerParams(
            dimension_semantics=("parallel",),
            vmem_limit_bytes=32 * 1024 * 1024,
        ),
        cost_estimate=pl.CostEstimate(
            flops=flops, transcendentals=0, bytes_accessed=bytes_accessed),
    )(z, w1, b1, w2, b2, w3, bias_noise)

    # (n_tiles, 1, TB) row-major flatten == batch order; drop padded rows.
    return out.reshape(Bp, 1)[:B]


def init_params(key, z_dim, hidden=512):
    """Deterministic init matching nn.Linear shapes (stored transposed:
    [in, out]) with a Kaiming-uniform-like scale. Kept in f32; the wrapper
    casts MXU operands to bf16."""
    ks = jax.random.split(key, 6)

    def lin(kw, kb, fan_in, fan_out):
        bound = 1.0 / jnp.sqrt(fan_in)
        w = jax.random.uniform(kw, (fan_in, fan_out), jnp.float32, -bound, bound)
        b = jax.random.uniform(kb, (1, fan_out), jnp.float32, -bound, bound)
        return w, b

    w1, b1 = lin(ks[0], ks[1], z_dim, hidden)
    w2, b2 = lin(ks[2], ks[3], hidden, hidden)
    w3, b3 = lin(ks[4], ks[5], hidden, 1)
    return {"w1": w1, "b1": b1, "w2": w2, "b2": b2, "w3": w3, "b3": b3}


def reference_forward(z, params, noise):
    """Pure-JAX f32 reference for correctness checking."""
    h = z @ params["w1"] + params["b1"]
    h = jnp.where(h >= 0, h, 0.2 * h)
    h = h @ params["w2"] + params["b2"]
    h = jnp.where(h >= 0, h, 0.2 * h)
    p = h @ params["w3"] + params["b3"]
    return p + noise


if __name__ == "__main__":
    key = jax.random.PRNGKey(0)
    k_param, k_z, k_noise, k_z2, k_n2 = jax.random.split(key, 5)

    Z_DIM, HIDDEN = 32, 512
    params = init_params(k_param, Z_DIM, HIDDEN)

    # Small demo case (B=8): single grid step, TB=8.
    B = 8
    z = jax.random.normal(k_z, (B, Z_DIM), jnp.float32)
    noise = jax.random.normal(k_noise, (B, 1), jnp.float32) * 1e-7

    preds = jax.block_until_ready(discriminator_forward(z, params, noise))
    ref = reference_forward(z, params, noise)
    assert preds.shape == (B, 1)
    # bf16 MXU operands (f32 accumulation) -> loosened tolerance vs f32 ref.
    # NOTE: the 1e-7 noise term is below bf16 logit resolution by design.
    assert jnp.allclose(preds, ref, atol=2e-2, rtol=2e-2), \
        float(jnp.max(jnp.abs(preds - ref)))

    # Larger case exercising batch padding, the >=2-grid-step split and the
    # lane-dense output path (TB=256, Bp=512, grid=(2,)).
    B2 = 300
    z2 = jax.random.normal(k_z2, (B2, Z_DIM), jnp.float32)
    n2 = jax.random.normal(k_n2, (B2, 1), jnp.float32) * 1e-7
    preds2 = jax.block_until_ready(discriminator_forward(z2, params, n2))
    ref2 = reference_forward(z2, params, n2)
    assert preds2.shape == (B2, 1)
    assert jnp.allclose(preds2, ref2, atol=2e-2, rtol=2e-2), \
        float(jnp.max(jnp.abs(preds2 - ref2)))

    print("KERNEL_OK")
</pallas_src>

<mosaic_0001>
module attributes {stable_mosaic.version = 11 : i64} {
  func.func @kernel(%arg0: i32, %arg1: memref<8x32xf32, #tpu.memory_space<vmem>>, %arg2: memref<32x512xbf16, #tpu.memory_space<vmem>>, %arg3: memref<1x512xf32, #tpu.memory_space<vmem>>, %arg4: memref<512x512xbf16, #tpu.memory_space<vmem>>, %arg5: memref<1x512xf32, #tpu.memory_space<vmem>>, %arg6: memref<8x512xbf16, #tpu.memory_space<vmem>>, %arg7: memref<1x1x8xf32, #tpu.memory_space<vmem>>, %arg8: memref<1x1x8xf32, #tpu.memory_space<vmem>>) attributes {dimension_semantics = [#tpu.dimension_semantics<parallel>], iteration_bounds = array<i64: 1>, scalar_prefetch = 0 : i64, scratch_operands = 0 : i64, tpu.core_type = #tpu.core_type<tc>, window_params = [{transform_indices = @transform_0, window_bounds = array<i64: 8, 32>}, {pipeline_mode = #tpu.pipeline_mode<synchronous>, transform_indices = @transform_1, window_bounds = array<i64: 32, 512>}, {pipeline_mode = #tpu.pipeline_mode<synchronous>, transform_indices = @transform_2, window_bounds = array<i64: 1, 512>}, {pipeline_mode = #tpu.pipeline_mode<synchronous>, transform_indices = @transform_3, window_bounds = array<i64: 512, 512>}, {pipeline_mode = #tpu.pipeline_mode<synchronous>, transform_indices = @transform_4, window_bounds = array<i64: 1, 512>}, {pipeline_mode = #tpu.pipeline_mode<synchronous>, transform_indices = @transform_5, window_bounds = array<i64: 8, 512>}, {transform_indices = @transform_6, window_bounds = array<i64: 1, 1, 8>}, {transform_indices = @transform_7, window_bounds = array<i64: 1, 1, 8>}]} {
    %c0 = arith.constant 0 : index
    %c0_0 = arith.constant 0 : index
    %0 = vector.load %arg1[%c0, %c0_0] : memref<8x32xf32, #tpu.memory_space<vmem>>, vector<8x32xf32>
    %1 = arith.truncf %0 : vector<8x32xf32> to vector<8x32xbf16>
    %c0_1 = arith.constant 0 : index
    %c0_2 = arith.constant 0 : index
    %2 = vector.load %arg2[%c0_1, %c0_2] : memref<32x512xbf16, #tpu.memory_space<vmem>>, vector<32x512xbf16>
    %cst = arith.constant dense<0.000000e+00> : vector<8x512xf32>
    %3 = tpu.matmul %1, %2, %cst {dimension_numbers = #tpu.dot_dimension_numbers<[1], [0], [0], [1], [0, 0, 1, 1], [], []>} : vector<8x32xbf16>, vector<32x512xbf16>, vector<8x512xf32> -> vector<8x512xf32>
    %c0_3 = arith.constant 0 : index
    %c0_4 = arith.constant 0 : index
    %4 = vector.load %arg3[%c0_3, %c0_4] : memref<1x512xf32, #tpu.memory_space<vmem>>, vector<1x512xf32>
    %5 = vector.broadcast %4 : vector<1x512xf32> to vector<8x512xf32>
    %6 = arith.addf %3, %5 : vector<8x512xf32>
    %cst_5 = arith.constant 2.000000e-01 : f32
    %7 = vector.broadcast %cst_5 : f32 to vector<8x512xf32>
    %8 = arith.mulf %7, %6 : vector<8x512xf32>
    %9 = arith.maximumf %6, %8 : vector<8x512xf32>
    %10 = arith.truncf %9 : vector<8x512xf32> to vector<8x512xbf16>
    %c0_6 = arith.constant 0 : index
    %c0_7 = arith.constant 0 : index
    %11 = vector.load %arg4[%c0_6, %c0_7] : memref<512x512xbf16, #tpu.memory_space<vmem>>, vector<512x512xbf16>
    %cst_8 = arith.constant dense<0.000000e+00> : vector<8x512xf32>
    %12 = tpu.matmul %10, %11, %cst_8 {dimension_numbers = #tpu.dot_dimension_numbers<[1], [0], [0], [1], [0, 0, 1, 1], [], []>} : vector<8x512xbf16>, vector<512x512xbf16>, vector<8x512xf32> -> vector<8x512xf32>
    %c0_9 = arith.constant 0 : index
    %c0_10 = arith.constant 0 : index
    %13 = vector.load %arg5[%c0_9, %c0_10] : memref<1x512xf32, #tpu.memory_space<vmem>>, vector<1x512xf32>
    %14 = vector.broadcast %13 : vector<1x512xf32> to vector<8x512xf32>
    %15 = arith.addf %12, %14 : vector<8x512xf32>
    %cst_11 = arith.constant 2.000000e-01 : f32
    %16 = vector.broadcast %cst_11 : f32 to vector<8x512xf32>
    %17 = arith.mulf %16, %15 : vector<8x512xf32>
    %18 = arith.maximumf %15, %17 : vector<8x512xf32>
    %c0_12 = arith.constant 0 : index
    %c0_13 = arith.constant 0 : index
    %19 = vector.load %arg6[%c0_12, %c0_13] : memref<8x512xbf16, #tpu.memory_space<vmem>>, vector<8x512xbf16>
    %20 = arith.truncf %18 : vector<8x512xf32> to vector<8x512xbf16>
    %cst_14 = arith.constant dense<0.000000e+00> : vector<8x8xf32>
    %21 = tpu.matmul %19, %20, %cst_14 {dimension_numbers = #tpu.dot_dimension_numbers<[1], [1], [0], [0], [0, 0, 1, 0], [], []>} : vector<8x512xbf16>, vector<8x512xbf16>, vector<8x8xf32> -> vector<8x8xf32>
    %22 = vector.extract_strided_slice %21 {offsets = [0, 0], sizes = [1, 8], strides = [1, 1]} : vector<8x8xf32> to vector<1x8xf32>
    %c0_15 = arith.constant 0 : index
    %c0_16 = arith.constant 0 : index
    %c0_17 = arith.constant 0 : index
    %23 = vector.load %arg7[%c0_15, %c0_16, %c0_17] : memref<1x1x8xf32, #tpu.memory_space<vmem>>, vector<1x1x8xf32>
    %24 = vector.shape_cast %23 : vector<1x1x8xf32> to vector<1x8xf32>
    %25 = arith.addf %22, %24 : vector<1x8xf32>
    %c0_18 = arith.constant 0 : index
    %c0_19 = arith.constant 0 : index
    %c0_20 = arith.constant 0 : index
    %26 = vector.load %arg8[%c0_18, %c0_19, %c0_20] : memref<1x1x8xf32, #tpu.memory_space<vmem>>, vector<1x1x8xf32>
    %27 = vector.shape_cast %26 : vector<1x1x8xf32> to vector<1x8xf32>
    %28 = vector.shape_cast %25 : vector<1x8xf32> to vector<1x1x8xf32>
    tpu.vector_store %arg8[%c0_18, %c0_19, %c0_20], %28 {strides = array<i32>} : memref<1x1x8xf32, #tpu.memory_space<vmem>>, vector<1x1x8xf32>,
    return
  }
  func.func @transform_0(%arg0: i32) -> (i32, i32) {
    %c0_i32 = arith.constant 0 : i32
    %c0_i32_0 = arith.constant 0 : i32
    return %arg0, %c0_i32 : i32, i32
  }
  func.func @transform_1(%arg0: i32) -> (i32, i32) {
    %c0_i32 = arith.constant 0 : i32
    %c0_i32_0 = arith.constant 0 : i32
    %c0_i32_1 = arith.constant 0 : i32
    return %c0_i32, %c0_i32_0 : i32, i32
  }
  func.func @transform_2(%arg0: i32) -> (i32, i32) {
    %c0_i32 = arith.constant 0 : i32
    %c0_i32_0 = arith.constant 0 : i32
    %c0_i32_1 = arith.constant 0 : i32
    return %c0_i32, %c0_i32_0 : i32, i32
  }
  func.func @transform_3(%arg0: i32) -> (i32, i32) {
    %c0_i32 = arith.constant 0 : i32
    %c0_i32_0 = arith.constant 0 : i32
    %c0_i32_1 = arith.constant 0 : i32
    return %c0_i32, %c0_i32_0 : i32, i32
  }
  func.func @transform_4(%arg0: i32) -> (i32, i32) {
    %c0_i32 = arith.constant 0 : i32
    %c0_i32_0 = arith.constant 0 : i32
    %c0_i32_1 = arith.constant 0 : i32
    return %c0_i32, %c0_i32_0 : i32, i32
  }
  func.func @transform_5(%arg0: i32) -> (i32, i32) {
    %c0_i32 = arith.constant 0 : i32
    %c0_i32_0 = arith.constant 0 : i32
    %c0_i32_1 = arith.constant 0 : i32
    return %c0_i32, %c0_i32_0 : i32, i32
  }
  func.func @transform_6(%arg0: i32) -> (i32, i32, i32) {
    %c0_i32 = arith.constant 0 : i32
    %c0_i32_0 = arith.constant 0 : i32
    %c0_i32_1 = arith.constant 0 : i32
    return %arg0, %c0_i32, %c0_i32_0 : i32, i32, i32
  }
  func.func @transform_7(%arg0: i32) -> (i32, i32, i32) {
    %c0_i32 = arith.constant 0 : i32
    %c0_i32_0 = arith.constant 0 : i32
    %c0_i32_1 = arith.constant 0 : i32
    return %arg0, %c0_i32, %c0_i32_0 : i32, i32, i32
  }
}

</mosaic_0001>

<llo_original>
// kernel: tpu_custom_call.1
$region0: #{tpu_custom_call.1}
  #allocation0 [shape = 'u32[]', space=smem, size = 0x4, offset = 0x4, fixed_abs, tag = 'smem constant byte address 0x4 - core index']
  #allocation1 [shape = 'u32[72,128]{1,0:T(1,128)}', space=vmem, size = 0x9000, scoped, tag = 'internal scratch']
  %s0 = inlined_call_operand.hbm [shape: f32[8,32], index: 0, kind: input, shape index: {}]
  %s1 = inlined_call_operand.hbm [shape: bf16[32,512], index: 1, kind: input, shape index: {}]
  %s2 = inlined_call_operand.hbm [shape: f32[1,512], index: 2, kind: input, shape index: {}]
  %s3 = inlined_call_operand.hbm [shape: bf16[512,512], index: 3, kind: input, shape index: {}]
  %s4 = inlined_call_operand.hbm [shape: f32[1,512], index: 4, kind: input, shape index: {}]
  %s5 = inlined_call_operand.hbm [shape: bf16[8,512], index: 5, kind: input, shape index: {}]
  %s6 = inlined_call_operand.vmem [shape: f32[1,1,8], index: 6, kind: input, shape index: {}]
  %s7 = inlined_call_operand.hbm [shape: f32[1,1,8], index: 7, kind: output, shape index: {}]
  %s8 = sld [smem:[#allocation0]]
  $region62: #{tpu_custom_call.1} parent=0
    _
  %s10 = ssub.s32 1, %s8
  %s11 = scalar_select 0, %s10, %s8
  $region1: #{tpu_custom_call.1} parent=0
    #allocation2 [shape = 'u8[4096]{0}', space=vmem, size = 0x1000, scoped, tag = 'input window, operand 0, single buffered']
    #allocation3 [shape = 's32[1]{0}', space=sflag, size = 0x4, scoped, tag = 'scoped memory for tpu_custom_call.1']
    #allocation4 [shape = 's32[1]{0}', space=sflag, size = 0x4, scoped, tag = 'scoped memory for tpu_custom_call.1']
    #allocation5 [shape = 'u8[32768]{0}', space=vmem, size = 0x8000, scoped, tag = 'input window, operand 1, single buffered']
    #allocation6 [shape = 's32[1]{0}', space=sflag, size = 0x4, scoped, tag = 'scoped memory for tpu_custom_call.1']
    #allocation7 [shape = 'u8[2048]{0}', space=vmem, size = 0x800, scoped, tag = 'input window, operand 2, single buffered']
    #allocation8 [shape = 'u8[524288]{0}', space=vmem, size = 0x80000, scoped, tag = 'input window, operand 3, single buffered']
    #allocation9 [shape = 's32[1]{0}', space=sflag, size = 0x4, scoped, tag = 'scoped memory for tpu_custom_call.1']
    #allocation10 [shape = 'u8[2048]{0}', space=vmem, size = 0x800, scoped, tag = 'input window, operand 4, single buffered']
    #allocation11 [shape = 'u8[8192]{0}', space=vmem, size = 0x2000, scoped, tag = 'input window, operand 5, single buffered']
    #allocation12 [shape = 's32[1]{0}', space=sflag, size = 0x4, scoped, tag = 'scoped memory for tpu_custom_call.1']
    #allocation13 [shape = 'u8[512]{0}', space=vmem, size = 0x400, scoped, tag = 'output window, operand 0, single buffered']
    %12 = vsyncpa [#allocation3], 0
    %13 = vsyncpa [#allocation6], 0
    %14 = vsyncpa [#allocation9], 0
    %15 = vsyncpa [#allocation12], 0
    %16 = vsyncpa [#allocation4], 0
    // Predicated region
    $region2: #{tpu_custom_call.1} parent=1 // pred_check
      _
    $region3: #{tpu_custom_call.1} parent=1 // pred_check_branch
      %18 = sbr.rel (0) target = $region5
    $region4: #{tpu_custom_call.1} parent=1 // pred_region
      %20 = vsyncadd [#allocation3], 0
      %s22 = sshll.u32 %s0, 4
      %s23 = int_to_ptr.hbm [resolvable:$true] %s22
      %s24 = sshll.u32 [#allocation2], 4
      %s25 = int_to_ptr.vmem [resolvable:$true] %s24
      %27 = dma.hbm_to_vmem [thread:$0]  %s23, 128, %s25, [#allocation3]
    $region5: #{tpu_custom_call.1} parent=1 // pred_fallthru
      _
    // Predicated region
    $region6: #{tpu_custom_call.1} parent=1 // pred_check
      _
    $region7: #{tpu_custom_call.1} parent=1 // pred_check_branch
      %29 = sbr.rel (0) target = $region9
    $region8: #{tpu_custom_call.1} parent=1 // pred_region
      %31 = vsyncadd [#allocation6], 0
      %s32 = sshll.u32 %s1, 4
      %s33 = int_to_ptr.hbm [resolvable:$true] %s32
      %s34 = sshll.u32 [#allocation5], 4
      %s35 = int_to_ptr.vmem [resolvable:$true] %s34
      %40 = dma.hbm_to_vmem [thread:$0]  %s33, 1024, %s35, [#allocation6], 256, 256, 16
    $region9: #{tpu_custom_call.1} parent=1 // pred_fallthru
      _
    // Predicated region
    $region10: #{tpu_custom_call.1} parent=1 // pred_check
      _
    $region11: #{tpu_custom_call.1} parent=1 // pred_check_branch
      %42 = sbr.rel (0) target = $region13
    $region12: #{tpu_custom_call.1} parent=1 // pred_region
      %44 = vsyncadd [#allocation6], 0
      %s46 = sshll.u32 %s2, 4
      %s47 = int_to_ptr.hbm [resolvable:$true] %s46
      %s48 = sshll.u32 [#allocation7], 4
      %s49 = int_to_ptr.vmem [resolvable:$true] %s48
      %51 = dma.hbm_to_vmem [thread:$0]  %s47, 64, %s49, [#allocation6]
    $region13: #{tpu_custom_call.1} parent=1 // pred_fallthru
      _
    // Predicated region
    $region14: #{tpu_custom_call.1} parent=1 // pred_check
      _
    $region15: #{tpu_custom_call.1} parent=1 // pred_check_branch
      %53 = sbr.rel (0) target = $region17
    $region16: #{tpu_custom_call.1} parent=1 // pred_region
      %55 = vsyncadd [#allocation9], 0
      %s56 = sshll.u32 %s3, 4
      %s57 = int_to_ptr.hbm [resolvable:$true] %s56
      %s58 = sshll.u32 [#allocation8], 4
      %s59 = int_to_ptr.vmem [resolvable:$true] %s58
      %64 = dma.hbm_to_vmem [thread:$0]  %s57, 16384, %s59, [#allocation9], 256, 256, 16
    $region17: #{tpu_custom_call.1} parent=1 // pred_fallthru
      _
    // Predicated region
    $region18: #{tpu_custom_call.1} parent=1 // pred_check
      _
    $region19: #{tpu_custom_call.1} parent=1 // pred_check_branch
      %66 = sbr.rel (0) target = $region21
    $region20: #{tpu_custom_call.1} parent=1 // pred_region
      %68 = vsyncadd [#allocation9], 0
      %s70 = sshll.u32 %s4, 4
      %s71 = int_to_ptr.hbm [resolvable:$true] %s70
      %s72 = sshll.u32 [#allocation10], 4
      %s73 = int_to_ptr.vmem [resolvable:$true] %s72
      %75 = dma.hbm_to_vmem [thread:$0]  %s71, 64, %s73, [#allocation9]
    $region21: #{tpu_custom_call.1} parent=1 // pred_fallthru
      _
    // Predicated region
    $region22: #{tpu_custom_call.1} parent=1 // pred_check
      _
    $region23: #{tpu_custom_call.1} parent=1 // pred_check_branch
      %77 = sbr.rel (0) target = $region25
    $region24: #{tpu_custom_call.1} parent=1 // pred_region
      %79 = vsyncadd [#allocation12], 0
      %s81 = sshll.u32 %s5, 4
      %s82 = int_to_ptr.hbm [resolvable:$true] %s81
      %s83 = sshll.u32 [#allocation11], 4
      %s84 = int_to_ptr.vmem [resolvable:$true] %s83
      %86 = dma.hbm_to_vmem [thread:$0]  %s82, 256, %s84, [#allocation12]
    $region25: #{tpu_custom_call.1} parent=1 // pred_fallthru
      _
    // Predicated region
    $region26: #{tpu_custom_call.1} parent=1 // pred_check
      _
    $region27: #{tpu_custom_call.1} parent=1 // pred_check_branch
      %88 = sbr.rel (0) target = $region29
    $region28: #{tpu_custom_call.1} parent=1 // pred_region
      _
    $region29: #{tpu_custom_call.1} parent=1 // pred_fallthru
      _
    // Predicated region
    $region30: #{tpu_custom_call.1} parent=1 // pred_check
      _
    $region31: #{tpu_custom_call.1} parent=1 // pred_check_branch
      %90 = sbr.rel (0) target = $region33
    $region32: #{tpu_custom_call.1} parent=1 // pred_region
      %92 = dma.done [#allocation3], 128
    $region33: #{tpu_custom_call.1} parent=1 // pred_fallthru
      _
    // Predicated region
    $region34: #{tpu_custom_call.1} parent=1 // pred_check
      _
    $region35: #{tpu_custom_call.1} parent=1 // pred_check_branch
      %94 = sbr.rel (0) target = $region37
    $region36: #{tpu_custom_call.1} parent=1 // pred_region
      %96 = dma.done [#allocation6], 1024
    $region37: #{tpu_custom_call.1} parent=1 // pred_fallthru
      _
    // Predicated region
    $region38: #{tpu_custom_call.1} parent=1 // pred_check
      _
    $region39: #{tpu_custom_call.1} parent=1 // pred_check_branch
      %98 = sbr.rel (0) target = $region41
    $region40: #{tpu_custom_call.1} parent=1 // pred_region
      %100 = dma.done [#allocation6], 64
    $region41: #{tpu_custom_call.1} parent=1 // pred_fallthru
      _
    // Predicated region
    $region42: #{tpu_custom_call.1} parent=1 // pred_check
      _
    $region43: #{tpu_custom_call.1} parent=1 // pred_check_branch
      %102 = sbr.rel (0) target = $region45
    $region44: #{tpu_custom_call.1} parent=1 // pred_region
      %104 = dma.done [#allocation9], 16384
    $region45: #{tpu_custom_call.1} parent=1 // pred_fallthru
      _
    // Predicated region
    $region46: #{tpu_custom_call.1} parent=1 // pred_check
      _
    $region47: #{tpu_custom_call.1} parent=1 // pred_check_branch
      %106 = sbr.rel (0) target = $region49
    $region48: #{tpu_custom_call.1} parent=1 // pred_region
      %108 = dma.done [#allocation9], 64
    $region49: #{tpu_custom_call.1} parent=1 // pred_fallthru
      _
    // Predicated region
    $region50: #{tpu_custom_call.1} parent=1 // pred_check
      _
    $region51: #{tpu_custom_call.1} parent=1 // pred_check_branch
      %110 = sbr.rel (0) target = $region53
    $region52: #{tpu_custom_call.1} parent=1 // pred_region
      %112 = dma.done [#allocation12], 256
    $region53: #{tpu_custom_call.1} parent=1 // pred_fallthru
      _
    %v114 = vld [vmem:[#allocation2] sm:$0xff]
    %v115 = vpack.c.bf16 %v114, %v114
    %v116 = vld [vmem:[#allocation5] sm:$0xff]
    %v117 = vld [vmem:[#allocation5 + $0x8] sm:$0xff]
    %v118 = vld [vmem:[#allocation5 + $0x10] sm:$0xff]
    %v119 = vld [vmem:[#allocation5 + $0x18] sm:$0xff]
    %v120 = vld [vmem:[#allocation5 + $0x20] sm:$0xff]
    %v121 = vld [vmem:[#allocation5 + $0x28] sm:$0xff]
    %v122 = vld [vmem:[#allocation5 + $0x30] sm:$0xff]
    %v123 = vld [vmem:[#allocation5 + $0x38] sm:$0xff]
    %v124 = vld [vmem:[#allocation7] sm:$0xf]
    %v126 = vperm.slane %v124, 0
    %v127 = vperm.slane %v124, 1
    %v128 = vperm.slane %v124, 2
    %v129 = vperm.slane %v124, 3
    %v142 = vunpack.c.l.b16 %v116
    %v143 = vunpack.c.h.b16 %v116
    %v144 = vunpack.c.l.b16 %v117
    %v145 = vunpack.c.h.b16 %v117
    %v146 = vunpack.c.l.b16 %v118
    %v147 = vunpack.c.h.b16 %v118
    %v148 = vunpack.c.l.b16 %v119
    %v149 = vunpack.c.h.b16 %v119
    %v150 = vunpack.c.l.b16 %v120
    %v151 = vunpack.c.h.b16 %v120
    %v152 = vunpack.c.l.b16 %v121
    %v153 = vunpack.c.h.b16 %v121
    %v154 = vunpack.c.l.b16 %v122
    %v155 = vunpack.c.h.b16 %v122
    %v156 = vunpack.c.l.b16 %v123
    %v157 = vunpack.c.h.b16 %v123
    %v158 = vpack.c.b16 %v146, %v142
    %v159 = vpack.c.b16 %v147, %v143
    %v160 = vpack.c.b16 %v148, %v144
    %v161 = vpack.c.b16 %v149, %v145
    %v162 = vpack.c.b16 %v154, %v150
    %v163 = vpack.c.b16 %v155, %v151
    %v164 = vpack.c.b16 %v156, %v152
    %v165 = vpack.c.b16 %v157, %v153
    %vm174 = vcmask 261120
    %v176 = vsel %vm174, %v115, 0
    %178 = vmatpush.bf16.msra.mxu0 0
    %179 = vmatpush.bf16.msra.mxu0 0
    %180 = vmatpush.bf16.msra.mxu0 0
    %181 = vmatpush.bf16.msra.mxu0 0
    %182 = vmatpush.bf16.msra.mxu0 0
    %183 = vmatpush.bf16.msra.mxu0 0
    %184 = vmatpush.bf16.msra.mxu0 %v162
    %185 = vmatpush.bf16.msra.mxu0 %v158
    %186 = vmatmul.bf16.gmra.mxu0 %v176
    %v187 = vpop.f32.mrf.mxu0
    %v188 = vadd.f32 %v126, %v187
    %v189 = vpop.f32.mrf.mxu0
    %190 = vdwg.mxu0
    %191 = vmatpush.bf16.msra.mxu0 0
    %192 = vmatpush.bf16.msra.mxu0 0
    %193 = vmatpush.bf16.msra.mxu0 0
    %194 = vmatpush.bf16.msra.mxu0 0
    %195 = vmatpush.bf16.msra.mxu0 0
    %196 = vmatpush.bf16.msra.mxu0 0
    %197 = vmatpush.bf16.msra.mxu0 %v163
    %198 = vmatpush.bf16.msra.mxu0 %v159
    %199 = vmatmul.bf16.gmra.mxu0 %v176
    %v200 = vpop.f32.mrf.mxu0
    %v201 = vadd.f32 %v127, %v200
    %v202 = vpop.f32.mrf.mxu0
    %203 = vdwg.mxu0
    %204 = vmatpush.bf16.msra.mxu0 0
    %205 = vmatpush.bf16.msra.mxu0 0
    %206 = vmatpush.bf16.msra.mxu0 0
    %207 = vmatpush.bf16.msra.mxu0 0
    %208 = vmatpush.bf16.msra.mxu0 0
    %209 = vmatpush.bf16.msra.mxu0 0
    %210 = vmatpush.bf16.msra.mxu0 %v164
    %211 = vmatpush.bf16.msra.mxu0 %v160
    %212 = vmatmul.bf16.gmra.mxu0 %v176
    %v213 = vpop.f32.mrf.mxu0
    %v214 = vadd.f32 %v128, %v213
    %v215 = vpop.f32.mrf.mxu0
    %216 = vdwg.mxu0
    %217 = vmatpush.bf16.msra.mxu0 0
    %218 = vmatpush.bf16.msra.mxu0 0
    %219 = vmatpush.bf16.msra.mxu0 0
    %220 = vmatpush.bf16.msra.mxu0 0
    %221 = vmatpush.bf16.msra.mxu0 0
    %222 = vmatpush.bf16.msra.mxu0 0
    %223 = vmatpush.bf16.msra.mxu0 %v165
    %224 = vmatpush.bf16.msra.mxu0 %v161
    %225 = vmatmul.bf16.gmra.mxu0 %v176
    %v226 = vpop.f32.mrf.mxu0
    %v227 = vadd.f32 %v129, %v226
    %v228 = vpop.f32.mrf.mxu0
    %229 = vdwg.mxu0
    %v230 = vmul.f32 %v188, 0.2
    %v231 = vmul.f32 %v201, 0.2
    %v232 = vmul.f32 %v214, 0.2
    %v233 = vmul.f32 %v227, 0.2
    %v234 = vmax.f32 %v188, %v230
    %v235 = vmax.f32 %v201, %v231
    %v236 = vmax.f32 %v214, %v232
    %v237 = vmax.f32 %v227, %v233
    %v238 = vpack.c.bf16 %v234, %v234
    %v239 = vpack.c.bf16 %v235, %v235
    %v240 = vpack.c.bf16 %v236, %v236
    %v241 = vpack.c.bf16 %v237, %v237
    %v242 = vld [vmem:[#allocation8] sm:$0xff]
    %v243 = vld [vmem:[#allocation8 + $0x8] sm:$0xff]
    %v244 = vld [vmem:[#allocation8 + $0x10] sm:$0xff]
    %v245 = vld [vmem:[#allocation8 + $0x18] sm:$0xff]
    %v246 = vld [vmem:[#allocation8 + $0x20] sm:$0xff]
    %v247 = vld [vmem:[#allocation8 + $0x28] sm:$0xff]
    %v248 = vld [vmem:[#allocation8 + $0x30] sm:$0xff]
    %v249 = vld [vmem:[#allocation8 + $0x38] sm:$0xff]
    %v250 = vld [vmem:[#allocation8 + $0x40] sm:$0xff]
    %v251 = vld [vmem:[#allocation8 + $0x48] sm:$0xff]
    %v252 = vld [vmem:[#allocation8 + $0x50] sm:$0xff]
    %v253 = vld [vmem:[#allocation8 + $0x58] sm:$0xff]
    %v254 = vld [vmem:[#allocation8 + $0x60] sm:$0xff]
    %v255 = vld [vmem:[#allocation8 + $0x68] sm:$0xff]
    %v256 = vld [vmem:[#allocation8 + $0x70] sm:$0xff]
    %v257 = vld [vmem:[#allocation8 + $0x78] sm:$0xff]
    %v258 = vld [vmem:[#allocation8 + $0x80] sm:$0xff]
    %v259 = vld [vmem:[#allocation8 + $0x88] sm:$0xff]
    %v260 = vld [vmem:[#allocation8 + $0x90] sm:$0xff]
    %v261 = vld [vmem:[#allocation8 + $0x98] sm:$0xff]
    %v262 = vld [vmem:[#allocation8 + $0xa0] sm:$0xff]
    %v263 = vld [vmem:[#allocation8 + $0xa8] sm:$0xff]
    %v264 = vld [vmem:[#allocation8 + $0xb0] sm:$0xff]
    %v265 = vld [vmem:[#allocation8 + $0xb8] sm:$0xff]
    %v266 = vld [vmem:[#allocation8 + $0xc0] sm:$0xff]
    %v267 = vld [vmem:[#allocation8 + $0xc8] sm:$0xff]
    %v268 = vld [vmem:[#allocation8 + $0xd0] sm:$0xff]
    %v269 = vld [vmem:[#allocation8 + $0xd8] sm:$0xff]
    %v270 = vld [vmem:[#allocation8 + $0xe0] sm:$0xff]
    %v271 = vld [vmem:[#allocation8 + $0xe8] sm:$0xff]
    %v272 = vld [vmem:[#allocation8 + $0xf0] sm:$0xff]
    %v273 = vld [vmem:[#allocation8 + $0xf8] sm:$0xff]
    %v274 = vld [vmem:[#allocation8 + $0x100] sm:$0xff]
    %v275 = vld [vmem:[#allocation8 + $0x108] sm:$0xff]
    %v276 = vld [vmem:[#allocation8 + $0x110] sm:$0xff]
    %v277 = vld [vmem:[#allocation8 + $0x118] sm:$0xff]
    %v278 = vld [vmem:[#allocation8 + $0x120] sm:$0xff]
    %v279 = vld [vmem:[#allocation8 + $0x128] sm:$0xff]
    %v280 = vld [vmem:[#allocation8 + $0x130] sm:$0xff]
    %v281 = vld [vmem:[#allocation8 + $0x138] sm:$0xff]
    %v282 = vld [vmem:[#allocation8 + $0x140] sm:$0xff]
    %v283 = vld [vmem:[#allocation8 + $0x148] sm:$0xff]
    %v284 = vld [vmem:[#allocation8 + $0x150] sm:$0xff]
    %v285 = vld [vmem:[#allocation8 + $0x158] sm:$0xff]
    %v286 = vld [vmem:[#allocation8 + $0x160] sm:$0xff]
    %v287 = vld [vmem:[#allocation8 + $0x168] sm:$0xff]
    %v288 = vld [vmem:[#allocation8 + $0x170] sm:$0xff]
    %v289 = vld [vmem:[#allocation8 + $0x178] sm:$0xff]
    %v290 = vld [vmem:[#allocation8 + $0x180] sm:$0xff]
    %v291 = vld [vmem:[#allocation8 + $0x188] sm:$0xff]
    %v292 = vld [vmem:[#allocation8 + $0x190] sm:$0xff]
    %v293 = vld [vmem:[#allocation8 + $0x198] sm:$0xff]
    %v294 = vld [vmem:[#allocation8 + $0x1a0] sm:$0xff]
    %v295 = vld [vmem:[#allocation8 + $0x1a8] sm:$0xff]
    %v296 = vld [vmem:[#allocation8 + $0x1b0] sm:$0xff]
    %v297 = vld [vmem:[#allocation8 + $0x1b8] sm:$0xff]
    %v298 = vld [vmem:[#allocation8 + $0x1c0] sm:$0xff]
    %v299 = vld [vmem:[#allocation8 + $0x1c8] sm:$0xff]
    %v300 = vld [vmem:[#allocation8 + $0x1d0] sm:$0xff]
    %v301 = vld [vmem:[#allocation8 + $0x1d8] sm:$0xff]
    %v302 = vld [vmem:[#allocation8 + $0x1e0] sm:$0xff]
    %v303 = vld [vmem:[#allocation8 + $0x1e8] sm:$0xff]
    %v304 = vld [vmem:[#allocation8 + $0x1f0] sm:$0xff]
    %v305 = vld [vmem:[#allocation8 + $0x1f8] sm:$0xff]
    %v306 = vld [vmem:[#allocation8 + $0x200] sm:$0xff]
    %v307 = vld [vmem:[#allocation8 + $0x208] sm:$0xff]
    %v308 = vld [vmem:[#allocation8 + $0x210] sm:$0xff]
    %v309 = vld [vmem:[#allocation8 + $0x218] sm:$0xff]
    %v310 = vld [vmem:[#allocation8 + $0x220] sm:$0xff]
    %v311 = vld [vmem:[#allocation8 + $0x228] sm:$0xff]
    %v312 = vld [vmem:[#allocation8 + $0x230] sm:$0xff]
    %v313 = vld [vmem:[#allocation8 + $0x238] sm:$0xff]
    %v314 = vld [vmem:[#allocation8 + $0x240] sm:$0xff]
    %v315 = vld [vmem:[#allocation8 + $0x248] sm:$0xff]
    %v316 = vld [vmem:[#allocation8 + $0x250] sm:$0xff]
    %v317 = vld [vmem:[#allocation8 + $0x258] sm:$0xff]
    %v318 = vld [vmem:[#allocation8 + $0x260] sm:$0xff]
    %v319 = vld [vmem:[#allocation8 + $0x268] sm:$0xff]
    %v320 = vld [vmem:[#allocation8 + $0x270] sm:$0xff]
    %v321 = vld [vmem:[#allocation8 + $0x278] sm:$0xff]
    %v322 = vld [vmem:[#allocation8 + $0x280] sm:$0xff]
    %v323 = vld [vmem:[#allocation8 + $0x288] sm:$0xff]
    %v324 = vld [vmem:[#allocation8 + $0x290] sm:$0xff]
    %v325 = vld [vmem:[#allocation8 + $0x298] sm:$0xff]
    %v326 = vld [vmem:[#allocation8 + $0x2a0] sm:$0xff]
    %v327 = vld [vmem:[#allocation8 + $0x2a8] sm:$0xff]
    %v328 = vld [vmem:[#allocation8 + $0x2b0] sm:$0xff]
    %v329 = vld [vmem:[#allocation8 + $0x2b8] sm:$0xff]
    %v330 = vld [vmem:[#allocation8 + $0x2c0] sm:$0xff]
    %v331 = vld [vmem:[#allocation8 + $0x2c8] sm:$0xff]
    %v332 = vld [vmem:[#allocation8 + $0x2d0] sm:$0xff]
    %v333 = vld [vmem:[#allocation8 + $0x2d8] sm:$0xff]
    %v334 = vld [vmem:[#allocation8 + $0x2e0] sm:$0xff]
    %v335 = vld [vmem:[#allocation8 + $0x2e8] sm:$0xff]
    %v336 = vld [vmem:[#allocation8 + $0x2f0] sm:$0xff]
    %v337 = vld [vmem:[#allocation8 + $0x2f8] sm:$0xff]
    %v338 = vld [vmem:[#allocation8 + $0x300] sm:$0xff]
    %v339 = vld [vmem:[#allocation8 + $0x308] sm:$0xff]
    %v340 = vld [vmem:[#allocation8 + $0x310] sm:$0xff]
    %v341 = vld [vmem:[#allocation8 + $0x318] sm:$0xff]
    %v342 = vld [vmem:[#allocation8 + $0x320] sm:$0xff]
    %v343 = vld [vmem:[#allocation8 + $0x328] sm:$0xff]
    %v344 = vld [vmem:[#allocation8 + $0x330] sm:$0xff]
    %v345 = vld [vmem:[#allocation8 + $0x338] sm:$0xff]
    %v346 = vld [vmem:[#allocation8 + $0x340] sm:$0xff]
    %v347 = vld [vmem:[#allocation8 + $0x348] sm:$0xff]
    %v348 = vld [vmem:[#allocation8 + $0x350] sm:$0xff]
    %v349 = vld [vmem:[#allocation8 + $0x358] sm:$0xff]
    %v350 = vld [vmem:[#allocation8 + $0x360] sm:$0xff]
    %v351 = vld [vmem:[#allocation8 + $0x368] sm:$0xff]
    %v352 = vld [vmem:[#allocation8 + $0x370] sm:$0xff]
    %v353 = vld [vmem:[#allocation8 + $0x378] sm:$0xff]
    %v354 = vld [vmem:[#allocation8 + $0x380] sm:$0xff]
    %v355 = vld [vmem:[#allocation8 + $0x388] sm:$0xff]
    %v356 = vld [vmem:[#allocation8 + $0x390] sm:$0xff]
    %v357 = vld [vmem:[#allocation8 + $0x398] sm:$0xff]
    %v358 = vld [vmem:[#allocation8 + $0x3a0] sm:$0xff]
    %v359 = vld [vmem:[#allocation8 + $0x3a8] sm:$0xff]
    %v360 = vld [vmem:[#allocation8 + $0x3b0] sm:$0xff]
    %v361 = vld [vmem:[#allocation8 + $0x3b8] sm:$0xff]
    %v362 = vld [vmem:[#allocation8 + $0x3c0] sm:$0xff]
    %v363 = vld [vmem:[#allocation8 + $0x3c8] sm:$0xff]
    %v364 = vld [vmem:[#allocation8 + $0x3d0] sm:$0xff]
    %v365 = vld [vmem:[#allocation8 + $0x3d8] sm:$0xff]
    %v366 = vld [vmem:[#allocation8 + $0x3e0] sm:$0xff]
    %v367 = vld [vmem:[#allocation8 + $0x3e8] sm:$0xff]
    %v368 = vld [vmem:[#allocation8 + $0x3f0] sm:$0xff]
    %v369 = vld [vmem:[#allocation8 + $0x3f8] sm:$0xff]
    %v370 = vld [vmem:[#allocation10] sm:$0xf]
    %v372 = vperm.slane %v370, 0
    %v373 = vperm.slane %v370, 1
    %v374 = vperm.slane %v370, 2
    %v375 = vperm.slane %v370, 3
    %v508 = vunpack.c.l.b16 %v242
    %v509 = vunpack.c.h.b16 %v242
    %v510 = vunpack.c.l.b16 %v243
    %v511 = vunpack.c.h.b16 %v243
    %v512 = vunpack.c.l.b16 %v244
    %v513 = vunpack.c.h.b16 %v244
    %v514 = vunpack.c.l.b16 %v245
    %v515 = vunpack.c.h.b16 %v245
    %v516 = vunpack.c.l.b16 %v246
    %v517 = vunpack.c.h.b16 %v246
    %v518 = vunpack.c.l.b16 %v247
    %v519 = vunpack.c.h.b16 %v247
    %v520 = vunpack.c.l.b16 %v248
    %v521 = vunpack.c.h.b16 %v248
    %v522 = vunpack.c.l.b16 %v249
    %v523 = vunpack.c.h.b16 %v249
    %v524 = vunpack.c.l.b16 %v250
    %v525 = vunpack.c.h.b16 %v250
    %v526 = vunpack.c.l.b16 %v251
    %v527 = vunpack.c.h.b16 %v251
    %v528 = vunpack.c.l.b16 %v252
    %v529 = vunpack.c.h.b16 %v252
    %v530 = vunpack.c.l.b16 %v253
    %v531 = vunpack.c.h.b16 %v253
    %v532 = vunpack.c.l.b16 %v254
    %v533 = vunpack.c.h.b16 %v254
    %v534 = vunpack.c.l.b16 %v255
    %v535 = vunpack.c.h.b16 %v255
    %v536 = vunpack.c.l.b16 %v256
    %v537 = vunpack.c.h.b16 %v256
    %v538 = vunpack.c.l.b16 %v257
    %v539 = vunpack.c.h.b16 %v257
    %v540 = vunpack.c.l.b16 %v258
    %v541 = vunpack.c.h.b16 %v258
    %v542 = vunpack.c.l.b16 %v259
    %v543 = vunpack.c.h.b16 %v259
    %v544 = vunpack.c.l.b16 %v260
    %v545 = vunpack.c.h.b16 %v260
    %v546 = vunpack.c.l.b16 %v261
    %v547 = vunpack.c.h.b16 %v261
    %v548 = vunpack.c.l.b16 %v262
    %v549 = vunpack.c.h.b16 %v262
    %v550 = vunpack.c.l.b16 %v263
    %v551 = vunpack.c.h.b16 %v263
    %v552 = vunpack.c.l.b16 %v264
    %v553 = vunpack.c.h.b16 %v264
    %v554 = vunpack.c.l.b16 %v265
    %v555 = vunpack.c.h.b16 %v265
    %v556 = vunpack.c.l.b16 %v266
    %v557 = vunpack.c.h.b16 %v266
    %v558 = vunpack.c.l.b16 %v267
    %v559 = vunpack.c.h.b16 %v267
    %v560 = vunpack.c.l.b16 %v268
    %v561 = vunpack.c.h.b16 %v268
    %v562 = vunpack.c.l.b16 %v269
    %v563 = vunpack.c.h.b16 %v269
    %v564 = vunpack.c.l.b16 %v270
    %v565 = vunpack.c.h.b16 %v270
    %v566 = vunpack.c.l.b16 %v271
    %v567 = vunpack.c.h.b16 %v271
    %v568 = vunpack.c.l.b16 %v272
    %v569 = vunpack.c.h.b16 %v272
    %v570 = vunpack.c.l.b16 %v273
    %v571 = vunpack.c.h.b16 %v273
    %v572 = vunpack.c.l.b16 %v274
    %v573 = vunpack.c.h.b16 %v274
    %v574 = vunpack.c.l.b16 %v275
    %v575 = vunpack.c.h.b16 %v275
    %v576 = vunpack.c.l.b16 %v276
    %v577 = vunpack.c.h.b16 %v276
    %v578 = vunpack.c.l.b16 %v277
    %v579 = vunpack.c.h.b16 %v277
    %v580 = vunpack.c.l.b16 %v278
    %v581 = vunpack.c.h.b16 %v278
    %v582 = vunpack.c.l.b16 %v279
    %v583 = vunpack.c.h.b16 %v279
    %v584 = vunpack.c.l.b16 %v280
    %v585 = vunpack.c.h.b16 %v280
    %v586 = vunpack.c.l.b16 %v281
    %v587 = vunpack.c.h.b16 %v281
    %v588 = vunpack.c.l.b16 %v282
    %v589 = vunpack.c.h.b16 %v282
    %v590 = vunpack.c.l.b16 %v283
    %v591 = vunpack.c.h.b16 %v283
    %v592 = vunpack.c.l.b16 %v284
    %v593 = vunpack.c.h.b16 %v284
    %v594 = vunpack.c.l.b16 %v285
    %v595 = vunpack.c.h.b16 %v285
    %v596 = vunpack.c.l.b16 %v286
    %v597 = vunpack.c.h.b16 %v286
    %v598 = vunpack.c.l.b16 %v287
    %v599 = vunpack.c.h.b16 %v287
    %v600 = vunpack.c.l.b16 %v288
    %v601 = vunpack.c.h.b16 %v288
    %v602 = vunpack.c.l.b16 %v289
    %v603 = vunpack.c.h.b16 %v289
    %v604 = vunpack.c.l.b16 %v290
    %v605 = vunpack.c.h.b16 %v290
    %v606 = vunpack.c.l.b16 %v291
    %v607 = vunpack.c.h.b16 %v291
    %v608 = vunpack.c.l.b16 %v292
    %v609 = vunpack.c.h.b16 %v292
    %v610 = vunpack.c.l.b16 %v293
    %v611 = vunpack.c.h.b16 %v293
    %v612 = vunpack.c.l.b16 %v294
    %v613 = vunpack.c.h.b16 %v294
    %v614 = vunpack.c.l.b16 %v295
    %v615 = vunpack.c.h.b16 %v295
    %v616 = vunpack.c.l.b16 %v296
    %v617 = vunpack.c.h.b16 %v296
    %v618 = vunpack.c.l.b16 %v297
    %v619 = vunpack.c.h.b16 %v297
    %v620 = vunpack.c.l.b16 %v298
    %v621 = vunpack.c.h.b16 %v298
    %v622 = vunpack.c.l.b16 %v299
    %v623 = vunpack.c.h.b16 %v299
    %v624 = vunpack.c.l.b16 %v300
    %v625 = vunpack.c.h.b16 %v300
    %v626 = vunpack.c.l.b16 %v301
    %v627 = vunpack.c.h.b16 %v301
    %v628 = vunpack.c.l.b16 %v302
    %v629 = vunpack.c.h.b16 %v302
    %v630 = vunpack.c.l.b16 %v303
    %v631 = vunpack.c.h.b16 %v303
    %v632 = vunpack.c.l.b16 %v304
    %v633 = vunpack.c.h.b16 %v304
    %v634 = vunpack.c.l.b16 %v305
    %v635 = vunpack.c.h.b16 %v305
    %v636 = vunpack.c.l.b16 %v306
    %v637 = vunpack.c.h.b16 %v306
    %v638 = vunpack.c.l.b16 %v307
    %v639 = vunpack.c.h.b16 %v307
    %v640 = vunpack.c.l.b16 %v308
    %v641 = vunpack.c.h.b16 %v308
    %v642 = vunpack.c.l.b16 %v309
    %v643 = vunpack.c.h.b16 %v309
    %v644 = vunpack.c.l.b16 %v310
    %v645 = vunpack.c.h.b16 %v310
    %v646 = vunpack.c.l.b16 %v311
    %v647 = vunpack.c.h.b16 %v311
    %v648 = vunpack.c.l.b16 %v312
    %v649 = vunpack.c.h.b16 %v312
    %v650 = vunpack.c.l.b16 %v313
    %v651 = vunpack.c.h.b16 %v313
    %v652 = vunpack.c.l.b16 %v314
    %v653 = vunpack.c.h.b16 %v314
    %v654 = vunpack.c.l.b16 %v315
    %v655 = vunpack.c.h.b16 %v315
    %v656 = vunpack.c.l.b16 %v316
    %v657 = vunpack.c.h.b16 %v316
    %v658 = vunpack.c.l.b16 %v317
    %v659 = vunpack.c.h.b16 %v317
    %v660 = vunpack.c.l.b16 %v318
    %v661 = vunpack.c.h.b16 %v318
    %v662 = vunpack.c.l.b16 %v319
    %v663 = vunpack.c.h.b16 %v319
    %v664 = vunpack.c.l.b16 %v320
    %v665 = vunpack.c.h.b16 %v320
    %v666 = vunpack.c.l.b16 %v321
    %v667 = vunpack.c.h.b16 %v321
    %v668 = vunpack.c.l.b16 %v322
    %v669 = vunpack.c.h.b16 %v322
    %v670 = vunpack.c.l.b16 %v323
    %v671 = vunpack.c.h.b16 %v323
    %v672 = vunpack.c.l.b16 %v324
    %v673 = vunpack.c.h.b16 %v324
    %v674 = vunpack.c.l.b16 %v325
    %v675 = vunpack.c.h.b16 %v325
    %v676 = vunpack.c.l.b16 %v326
    %v677 = vunpack.c.h.b16 %v326
    %v678 = vunpack.c.l.b16 %v327
    %v679 = vunpack.c.h.b16 %v327
    %v680 = vunpack.c.l.b16 %v328
    %v681 = vunpack.c.h.b16 %v328
    %v682 = vunpack.c.l.b16 %v329
    %v683 = vunpack.c.h.b16 %v329
    %v684 = vunpack.c.l.b16 %v330
    %v685 = vunpack.c.h.b16 %v330
    %v686 = vunpack.c.l.b16 %v331
    %v687 = vunpack.c.h.b16 %v331
    %v688 = vunpack.c.l.b16 %v332
    %v689 = vunpack.c.h.b16 %v332
    %v690 = vunpack.c.l.b16 %v333
    %v691 = vunpack.c.h.b16 %v333
    %v692 = vunpack.c.l.b16 %v334
    %v693 = vunpack.c.h.b16 %v334
    %v694 = vunpack.c.l.b16 %v335
    %v695 = vunpack.c.h.b16 %v335
    %v696 = vunpack.c.l.b16 %v336
    %v697 = vunpack.c.h.b16 %v336
    %v698 = vunpack.c.l.b16 %v337
    %v699 = vunpack.c.h.b16 %v337
    %v700 = vunpack.c.l.b16 %v338
    %v701 = vunpack.c.h.b16 %v338
    %v702 = vunpack.c.l.b16 %v339
    %v703 = vunpack.c.h.b16 %v339
    %v704 = vunpack.c.l.b16 %v340
    %v705 = vunpack.c.h.b16 %v340
    %v706 = vunpack.c.l.b16 %v341
    %v707 = vunpack.c.h.b16 %v341
    %v708 = vunpack.c.l.b16 %v342
    %v709 = vunpack.c.h.b16 %v342
    %v710 = vunpack.c.l.b16 %v343
    %v711 = vunpack.c.h.b16 %v343
    %v712 = vunpack.c.l.b16 %v344
    %v713 = vunpack.c.h.b16 %v344
    %v714 = vunpack.c.l.b16 %v345
    %v715 = vunpack.c.h.b16 %v345
    %v716 = vunpack.c.l.b16 %v346
    %v717 = vunpack.c.h.b16 %v346
    %v718 = vunpack.c.l.b16 %v347
    %v719 = vunpack.c.h.b16 %v347
    %v720 = vunpack.c.l.b16 %v348
    %v721 = vunpack.c.h.b16 %v348
    %v722 = vunpack.c.l.b16 %v349
    %v723 = vunpack.c.h.b16 %v349
    %v724 = vunpack.c.l.b16 %v350
    %v725 = vunpack.c.h.b16 %v350
    %v726 = vunpack.c.l.b16 %v351
    %v727 = vunpack.c.h.b16 %v351
    %v728 = vunpack.c.l.b16 %v352
    %v729 = vunpack.c.h.b16 %v352
    %v730 = vunpack.c.l.b16 %v353
    %v731 = vunpack.c.h.b16 %v353
    %v732 = vunpack.c.l.b16 %v354
    %v733 = vunpack.c.h.b16 %v354
    %v734 = vunpack.c.l.b16 %v355
    %v735 = vunpack.c.h.b16 %v355
    %v736 = vunpack.c.l.b16 %v356
    %v737 = vunpack.c.h.b16 %v356
    %v738 = vunpack.c.l.b16 %v357
    %v739 = vunpack.c.h.b16 %v357
    %v740 = vunpack.c.l.b16 %v358
    %v741 = vunpack.c.h.b16 %v358
    %v742 = vunpack.c.l.b16 %v359
    %v743 = vunpack.c.h.b16 %v359
    %v744 = vunpack.c.l.b16 %v360
    %v745 = vunpack.c.h.b16 %v360
    %v746 = vunpack.c.l.b16 %v361
    %v747 = vunpack.c.h.b16 %v361
    %v748 = vunpack.c.l.b16 %v362
    %v749 = vunpack.c.h.b16 %v362
    %v750 = vunpack.c.l.b16 %v363
    %v751 = vunpack.c.h.b16 %v363
    %v752 = vunpack.c.l.b16 %v364
    %v753 = vunpack.c.h.b16 %v364
    %v754 = vunpack.c.l.b16 %v365
    %v755 = vunpack.c.h.b16 %v365
    %v756 = vunpack.c.l.b16 %v366
    %v757 = vunpack.c.h.b16 %v366
    %v758 = vunpack.c.l.b16 %v367
    %v759 = vunpack.c.h.b16 %v367
    %v760 = vunpack.c.l.b16 %v368
    %v761 = vunpack.c.h.b16 %v368
    %v762 = vunpack.c.l.b16 %v369
    %v763 = vunpack.c.h.b16 %v369
    %v764 = vpack.c.b16 %v512, %v508
    %v765 = vpack.c.b16 %v513, %v509
    %v766 = vpack.c.b16 %v514, %v510
    %v767 = vpack.c.b16 %v515, %v511
    %v768 = vpack.c.b16 %v520, %v516
    %v769 = vpack.c.b16 %v521, %v517
    %v770 = vpack.c.b16 %v522, %v518
    %v771 = vpack.c.b16 %v523, %v519
    %v772 = vpack.c.b16 %v528, %v524
    %v773 = vpack.c.b16 %v529, %v525
    %v774 = vpack.c.b16 %v530, %v526
    %v775 = vpack.c.b16 %v531, %v527
    %v776 = vpack.c.b16 %v536, %v532
    %v777 = vpack.c.b16 %v537, %v533
    %v778 = vpack.c.b16 %v538, %v534
    %v779 = vpack.c.b16 %v539, %v535
    %v780 = vpack.c.b16 %v544, %v540
    %v781 = vpack.c.b16 %v545, %v541
    %v782 = vpack.c.b16 %v546, %v542
    %v783 = vpack.c.b16 %v547, %v543
    %v784 = vpack.c.b16 %v552, %v548
    %v785 = vpack.c.b16 %v553, %v549
    %v786 = vpack.c.b16 %v554, %v550
    %v787 = vpack.c.b16 %v555, %v551
    %v788 = vpack.c.b16 %v560, %v556
    %v789 = vpack.c.b16 %v561, %v557
    %v790 = vpack.c.b16 %v562, %v558
    %v791 = vpack.c.b16 %v563, %v559
    %v792 = vpack.c.b16 %v568, %v564
    %v793 = vpack.c.b16 %v569, %v565
    %v794 = vpack.c.b16 %v570, %v566
    %v795 = vpack.c.b16 %v571, %v567
    %v796 = vpack.c.b16 %v576, %v572
    %v797 = vpack.c.b16 %v577, %v573
    %v798 = vpack.c.b16 %v578, %v574
    %v799 = vpack.c.b16 %v579, %v575
    %v800 = vpack.c.b16 %v584, %v580
    %v801 = vpack.c.b16 %v585, %v581
    %v802 = vpack.c.b16 %v586, %v582
    %v803 = vpack.c.b16 %v587, %v583
    %v804 = vpack.c.b16 %v592, %v588
    %v805 = vpack.c.b16 %v593, %v589
    %v806 = vpack.c.b16 %v594, %v590
    %v807 = vpack.c.b16 %v595, %v591
    %v808 = vpack.c.b16 %v600, %v596
    %v809 = vpack.c.b16 %v601, %v597
    %v810 = vpack.c.b16 %v602, %v598
    %v811 = vpack.c.b16 %v603, %v599
    %v812 = vpack.c.b16 %v608, %v604
    %v813 = vpack.c.b16 %v609, %v605
    %v814 = vpack.c.b16 %v610, %v606
    %v815 = vpack.c.b16 %v611, %v607
    %v816 = vpack.c.b16 %v616, %v612
    %v817 = vpack.c.b16 %v617, %v613
    %v818 = vpack.c.b16 %v618, %v614
    %v819 = vpack.c.b16 %v619, %v615
    %v820 = vpack.c.b16 %v624, %v620
    %v821 = vpack.c.b16 %v625, %v621
    %v822 = vpack.c.b16 %v626, %v622
    %v823 = vpack.c.b16 %v627, %v623
    %v824 = vpack.c.b16 %v632, %v628
    %v825 = vpack.c.b16 %v633, %v629
    %v826 = vpack.c.b16 %v634, %v630
    %v827 = vpack.c.b16 %v635, %v631
    %v828 = vpack.c.b16 %v640, %v636
    %v829 = vpack.c.b16 %v641, %v637
    %v830 = vpack.c.b16 %v642, %v638
    %v831 = vpack.c.b16 %v643, %v639
    %v832 = vpack.c.b16 %v648, %v644
    %v833 = vpack.c.b16 %v649, %v645
    %v834 = vpack.c.b16 %v650, %v646
    %v835 = vpack.c.b16 %v651, %v647
    %v836 = vpack.c.b16 %v656, %v652
    %v837 = vpack.c.b16 %v657, %v653
    %v838 = vpack.c.b16 %v658, %v654
    %v839 = vpack.c.b16 %v659, %v655
    %v840 = vpack.c.b16 %v664, %v660
    %v841 = vpack.c.b16 %v665, %v661
    %v842 = vpack.c.b16 %v666, %v662
    %v843 = vpack.c.b16 %v667, %v663
    %v844 = vpack.c.b16 %v672, %v668
    %v845 = vpack.c.b16 %v673, %v669
    %v846 = vpack.c.b16 %v674, %v670
    %v847 = vpack.c.b16 %v675, %v671
    %v848 = vpack.c.b16 %v680, %v676
    %v849 = vpack.c.b16 %v681, %v677
    %v850 = vpack.c.b16 %v682, %v678
    %v851 = vpack.c.b16 %v683, %v679
    %v852 = vpack.c.b16 %v688, %v684
    %v853 = vpack.c.b16 %v689, %v685
    %v854 = vpack.c.b16 %v690, %v686
    %v855 = vpack.c.b16 %v691, %v687
    %v856 = vpack.c.b16 %v696, %v692
    %v857 = vpack.c.b16 %v697, %v693
    %v858 = vpack.c.b16 %v698, %v694
    %v859 = vpack.c.b16 %v699, %v695
    %v860 = vpack.c.b16 %v704, %v700
    %v861 = vpack.c.b16 %v705, %v701
    %v862 = vpack.c.b16 %v706, %v702
    %v863 = vpack.c.b16 %v707, %v703
    %v864 = vpack.c.b16 %v712, %v708
    %v865 = vpack.c.b16 %v713, %v709
    %v866 = vpack.c.b16 %v714, %v710
    %v867 = vpack.c.b16 %v715, %v711
    %v868 = vpack.c.b16 %v720, %v716
    %v869 = vpack.c.b16 %v721, %v717
    %v870 = vpack.c.b16 %v722, %v718
    %v871 = vpack.c.b16 %v723, %v719
    %v872 = vpack.c.b16 %v728, %v724
    %v873 = vpack.c.b16 %v729, %v725
    %v874 = vpack.c.b16 %v730, %v726
    %v875 = vpack.c.b16 %v731, %v727
    %v876 = vpack.c.b16 %v736, %v732
    %v877 = vpack.c.b16 %v737, %v733
    %v878 = vpack.c.b16 %v738, %v734
    %v879 = vpack.c.b16 %v739, %v735
    %v880 = vpack.c.b16 %v744, %v740
    %v881 = vpack.c.b16 %v745, %v741
    %v882 = vpack.c.b16 %v746, %v742
    %v883 = vpack.c.b16 %v747, %v743
    %v884 = vpack.c.b16 %v752, %v748
    %v885 = vpack.c.b16 %v753, %v749
    %v886 = vpack.c.b16 %v754, %v750
    %v887 = vpack.c.b16 %v755, %v751
    %v888 = vpack.c.b16 %v760, %v756
    %v889 = vpack.c.b16 %v761, %v757
    %v890 = vpack.c.b16 %v762, %v758
    %v891 = vpack.c.b16 %v763, %v759
    %1020 = vmatpush.bf16.msra.mxu0 %v792
    %1021 = vmatpush.bf16.msra.mxu0 %v788
    %1022 = vmatpush.bf16.msra.mxu0 %v784
    %1023 = vmatpush.bf16.msra.mxu0 %v780
    %1024 = vmatpush.bf16.msra.mxu0 %v776
    %1025 = vmatpush.bf16.msra.mxu0 %v772
    %1026 = vmatpush.bf16.msra.mxu0 %v768
    %1027 = vmatpush.bf16.msra.mxu0 %v764
    %1028 = vmatmul.bf16.gmra.mxu0 %v238
    %v1029 = vpop.f32.mrf.mxu0
    %v1030 = vadd.f32 %v372, %v1029
    %v1031 = vpop.f32.mrf.mxu0
    %1032 = vdwg.mxu0
    %1033 = vmatpush.bf16.msra.mxu0 %v824
    %1034 = vmatpush.bf16.msra.mxu0 %v820
    %1035 = vmatpush.bf16.msra.mxu0 %v816
    %1036 = vmatpush.bf16.msra.mxu0 %v812
    %1037 = vmatpush.bf16.msra.mxu0 %v808
    %1038 = vmatpush.bf16.msra.mxu0 %v804
    %1039 = vmatpush.bf16.msra.mxu0 %v800
    %1040 = vmatpush.bf16.msra.mxu0 %v796
    %1041 = vmatmul.bf16.gmra.mxu0 %v239
    %v1042 = vpop.f32.mrf.mxu0
    %v1043 = vadd.f32 %v1030, %v1042
    %v1044 = vpop.f32.mrf.mxu0
    %1045 = vdwg.mxu0
    %1046 = vmatpush.bf16.msra.mxu0 %v856
    %1047 = vmatpush.bf16.msra.mxu0 %v852
    %1048 = vmatpush.bf16.msra.mxu0 %v848
    %1049 = vmatpush.bf16.msra.mxu0 %v844
    %1050 = vmatpush.bf16.msra.mxu0 %v840
    %1051 = vmatpush.bf16.msra.mxu0 %v836
    %1052 = vmatpush.bf16.msra.mxu0 %v832
    %1053 = vmatpush.bf16.msra.mxu0 %v828
    %1054 = vmatmul.bf16.gmra.mxu0 %v240
    %v1055 = vpop.f32.mrf.mxu0
    %v1056 = vadd.f32 %v1043, %v1055
    %v1057 = vpop.f32.mrf.mxu0
    %1058 = vdwg.mxu0
    %1059 = vmatpush.bf16.msra.mxu0 %v888
    %1060 = vmatpush.bf16.msra.mxu0 %v884
    %1061 = vmatpush.bf16.msra.mxu0 %v880
    %1062 = vmatpush.bf16.msra.mxu0 %v876
    %1063 = vmatpush.bf16.msra.mxu0 %v872
    %1064 = vmatpush.bf16.msra.mxu0 %v868
    %1065 = vmatpush.bf16.msra.mxu0 %v864
    %1066 = vmatpush.bf16.msra.mxu0 %v860
    %1067 = vmatmul.bf16.gmra.mxu0 %v241
    %v1068 = vpop.f32.mrf.mxu0
    %v1069 = vadd.f32 %v1056, %v1068
    %v1070 = vpop.f32.mrf.mxu0
    %1071 = vdwg.mxu0
    %1072 = vmatpush.bf16.msra.mxu0 %v793
    %1073 = vmatpush.bf16.msra.mxu0 %v789
    %1074 = vmatpush.bf16.msra.mxu0 %v785
    %1075 = vmatpush.bf16.msra.mxu0 %v781
    %1076 = vmatpush.bf16.msra.mxu0 %v777
    %1077 = vmatpush.bf16.msra.mxu0 %v773
    %1078 = vmatpush.bf16.msra.mxu0 %v769
    %1079 = vmatpush.bf16.msra.mxu0 %v765
    %1080 = vmatmul.bf16.gmra.mxu0 %v238
    %v1081 = vpop.f32.mrf.mxu0
    %v1082 = vadd.f32 %v373, %v1081
    %v1083 = vpop.f32.mrf.mxu0
    %1084 = vdwg.mxu0
    %1085 = vmatpush.bf16.msra.mxu0 %v825
    %1086 = vmatpush.bf16.msra.mxu0 %v821
    %1087 = vmatpush.bf16.msra.mxu0 %v817
    %1088 = vmatpush.bf16.msra.mxu0 %v813
    %1089 = vmatpush.bf16.msra.mxu0 %v809
    %1090 = vmatpush.bf16.msra.mxu0 %v805
    %1091 = vmatpush.bf16.msra.mxu0 %v801
    %1092 = vmatpush.bf16.msra.mxu0 %v797
    %1093 = vmatmul.bf16.gmra.mxu0 %v239
    %v1094 = vpop.f32.mrf.mxu0
    %v1095 = vadd.f32 %v1082, %v1094
    %v1096 = vpop.f32.mrf.mxu0
    %1097 = vdwg.mxu0
    %1098 = vmatpush.bf16.msra.mxu0 %v857
    %1099 = vmatpush.bf16.msra.mxu0 %v853
    %1100 = vmatpush.bf16.msra.mxu0 %v849
    %1101 = vmatpush.bf16.msra.mxu0 %v845
    %1102 = vmatpush.bf16.msra.mxu0 %v841
    %1103 = vmatpush.bf16.msra.mxu0 %v837
    %1104 = vmatpush.bf16.msra.mxu0 %v833
    %1105 = vmatpush.bf16.msra.mxu0 %v829
    %1106 = vmatmul.bf16.gmra.mxu0 %v240
    %v1107 = vpop.f32.mrf.mxu0
    %v1108 = vadd.f32 %v1095, %v1107
    %v1109 = vpop.f32.mrf.mxu0
    %1110 = vdwg.mxu0
    %1111 = vmatpush.bf16.msra.mxu0 %v889
    %1112 = vmatpush.bf16.msra.mxu0 %v885
    %1113 = vmatpush.bf16.msra.mxu0 %v881
    %1114 = vmatpush.bf16.msra.mxu0 %v877
    %1115 = vmatpush.bf16.msra.mxu0 %v873
    %1116 = vmatpush.bf16.msra.mxu0 %v869
    %1117 = vmatpush.bf16.msra.mxu0 %v865
    %1118 = vmatpush.bf16.msra.mxu0 %v861
    %1119 = vmatmul.bf16.gmra.mxu0 %v241
    %v1120 = vpop.f32.mrf.mxu0
    %v1121 = vadd.f32 %v1108, %v1120
    %v1122 = vpop.f32.mrf.mxu0
    %1123 = vdwg.mxu0
    %1124 = vmatpush.bf16.msra.mxu0 %v794
    %1125 = vmatpush.bf16.msra.mxu0 %v790
    %1126 = vmatpush.bf16.msra.mxu0 %v786
    %1127 = vmatpush.bf16.msra.mxu0 %v782
    %1128 = vmatpush.bf16.msra.mxu0 %v778
    %1129 = vmatpush.bf16.msra.mxu0 %v774
    %1130 = vmatpush.bf16.msra.mxu0 %v770
    %1131 = vmatpush.bf16.msra.mxu0 %v766
    %1132 = vmatmul.bf16.gmra.mxu0 %v238
    %v1133 = vpop.f32.mrf.mxu0
    %v1134 = vadd.f32 %v374, %v1133
    %v1135 = vpop.f32.mrf.mxu0
    %1136 = vdwg.mxu0
    %1137 = vmatpush.bf16.msra.mxu0 %v826
    %1138 = vmatpush.bf16.msra.mxu0 %v822
    %1139 = vmatpush.bf16.msra.mxu0 %v818
    %1140 = vmatpush.bf16.msra.mxu0 %v814
    %1141 = vmatpush.bf16.msra.mxu0 %v810
    %1142 = vmatpush.bf16.msra.mxu0 %v806
    %1143 = vmatpush.bf16.msra.mxu0 %v802
    %1144 = vmatpush.bf16.msra.mxu0 %v798
    %1145 = vmatmul.bf16.gmra.mxu0 %v239
    %v1146 = vpop.f32.mrf.mxu0
    %v1147 = vadd.f32 %v1134, %v1146
    %v1148 = vpop.f32.mrf.mxu0
    %1149 = vdwg.mxu0
    %1150 = vmatpush.bf16.msra.mxu0 %v858
    %1151 = vmatpush.bf16.msra.mxu0 %v854
    %1152 = vmatpush.bf16.msra.mxu0 %v850
    %1153 = vmatpush.bf16.msra.mxu0 %v846
    %1154 = vmatpush.bf16.msra.mxu0 %v842
    %1155 = vmatpush.bf16.msra.mxu0 %v838
    %1156 = vmatpush.bf16.msra.mxu0 %v834
    %1157 = vmatpush.bf16.msra.mxu0 %v830
    %1158 = vmatmul.bf16.gmra.mxu0 %v240
    %v1159 = vpop.f32.mrf.mxu0
    %v1160 = vadd.f32 %v1147, %v1159
    %v1161 = vpop.f32.mrf.mxu0
    %1162 = vdwg.mxu0
    %1163 = vmatpush.bf16.msra.mxu0 %v890
    %1164 = vmatpush.bf16.msra.mxu0 %v886
    %1165 = vmatpush.bf16.msra.mxu0 %v882
    %1166 = vmatpush.bf16.msra.mxu0 %v878
    %1167 = vmatpush.bf16.msra.mxu0 %v874
    %1168 = vmatpush.bf16.msra.mxu0 %v870
    %1169 = vmatpush.bf16.msra.mxu0 %v866
    %1170 = vmatpush.bf16.msra.mxu0 %v862
    %1171 = vmatmul.bf16.gmra.mxu0 %v241
    %v1172 = vpop.f32.mrf.mxu0
    %v1173 = vadd.f32 %v1160, %v1172
    %v1174 = vpop.f32.mrf.mxu0
    %1175 = vdwg.mxu0
    %1176 = vmatpush.bf16.msra.mxu0 %v795
    %1177 = vmatpush.bf16.msra.mxu0 %v791
    %1178 = vmatpush.bf16.msra.mxu0 %v787
    %1179 = vmatpush.bf16.msra.mxu0 %v783
    %1180 = vmatpush.bf16.msra.mxu0 %v779
    %1181 = vmatpush.bf16.msra.mxu0 %v775
    %1182 = vmatpush.bf16.msra.mxu0 %v771
    %1183 = vmatpush.bf16.msra.mxu0 %v767
    %1184 = vmatmul.bf16.gmra.mxu0 %v238
    %v1185 = vpop.f32.mrf.mxu0
    %v1186 = vadd.f32 %v375, %v1185
    %v1187 = vpop.f32.mrf.mxu0
    %1188 = vdwg.mxu0
    %1189 = vmatpush.bf16.msra.mxu0 %v827
    %1190 = vmatpush.bf16.msra.mxu0 %v823
    %1191 = vmatpush.bf16.msra.mxu0 %v819
    %1192 = vmatpush.bf16.msra.mxu0 %v815
    %1193 = vmatpush.bf16.msra.mxu0 %v811
    %1194 = vmatpush.bf16.msra.mxu0 %v807
    %1195 = vmatpush.bf16.msra.mxu0 %v803
    %1196 = vmatpush.bf16.msra.mxu0 %v799
    %1197 = vmatmul.bf16.gmra.mxu0 %v239
    %v1198 = vpop.f32.mrf.mxu0
    %v1199 = vadd.f32 %v1186, %v1198
    %v1200 = vpop.f32.mrf.mxu0
    %1201 = vdwg.mxu0
    %1202 = vmatpush.bf16.msra.mxu0 %v859
    %1203 = vmatpush.bf16.msra.mxu0 %v855
    %1204 = vmatpush.bf16.msra.mxu0 %v851
    %1205 = vmatpush.bf16.msra.mxu0 %v847
    %1206 = vmatpush.bf16.msra.mxu0 %v843
    %1207 = vmatpush.bf16.msra.mxu0 %v839
    %1208 = vmatpush.bf16.msra.mxu0 %v835
    %1209 = vmatpush.bf16.msra.mxu0 %v831
    %1210 = vmatmul.bf16.gmra.mxu0 %v240
    %v1211 = vpop.f32.mrf.mxu0
    %v1212 = vadd.f32 %v1199, %v1211
    %v1213 = vpop.f32.mrf.mxu0
    %1214 = vdwg.mxu0
    %1215 = vmatpush.bf16.msra.mxu0 %v891
    %1216 = vmatpush.bf16.msra.mxu0 %v887
    %1217 = vmatpush.bf16.msra.mxu0 %v883
    %1218 = vmatpush.bf16.msra.mxu0 %v879
    %1219 = vmatpush.bf16.msra.mxu0 %v875
    %1220 = vmatpush.bf16.msra.mxu0 %v871
    %1221 = vmatpush.bf16.msra.mxu0 %v867
    %1222 = vmatpush.bf16.msra.mxu0 %v863
    %1223 = vmatmul.bf16.gmra.mxu0 %v241
    %v1224 = vpop.f32.mrf.mxu0
    %v1225 = vadd.f32 %v1212, %v1224
    %v1226 = vpop.f32.mrf.mxu0
    %1227 = vdwg.mxu0
    %v1228 = vmul.f32 %v1069, 0.2
    %v1229 = vmul.f32 %v1121, 0.2
    %v1230 = vmul.f32 %v1173, 0.2
    %v1231 = vmul.f32 %v1225, 0.2
    %v1232 = vmax.f32 %v1069, %v1228
    %v1233 = vmax.f32 %v1121, %v1229
    %v1234 = vmax.f32 %v1173, %v1230
    %v1235 = vmax.f32 %v1225, %v1231
    %v1236 = vld [vmem:[#allocation11] sm:$0xff]
    %v1237 = vld [vmem:[#allocation11 + $0x8] sm:$0xff]
    %v1238 = vpack.c.bf16 %v1232, %v1232
    %v1239 = vpack.c.bf16 %v1233, %v1233
    %v1240 = vpack.c.bf16 %v1234, %v1234
    %v1241 = vpack.c.bf16 %v1235, %v1235
    %v1244 = vunpack.c.l.b16 %v1236
    %v1245 = vunpack.c.h.b16 %v1236
    %v1246 = vunpack.c.l.b16 %v1237
    %v1247 = vunpack.c.h.b16 %v1237
    %v1248 = vpack.c.b16 %v1244, %v1244
    %v1249 = vpack.c.b16 %v1245, %v1245
    %v1250 = vpack.c.b16 %v1246, %v1246
    %v1251 = vpack.c.b16 %v1247, %v1247
    %1256 = vmatpush.bf16.xpose.msra.mxu0 0
    %1257 = vmatpush.bf16.xpose.msra.mxu0 0
    %1258 = vmatpush.bf16.xpose.msra.mxu0 0
    %1259 = vmatpush.bf16.xpose.msra.mxu0 0
    %1260 = vmatpush.bf16.xpose.msra.mxu0 0
    %1261 = vmatpush.bf16.xpose.msra.mxu0 0
    %1262 = vmatpush.bf16.xpose.msra.mxu0 0
    %1263 = vmatpush.bf16.xpose.msra.mxu0 %v1238
    %1264 = vmatmul.bf16.gmra.mxu0 %v1248
    %v1265 = vpop.f32.mrf.mxu0
    %v1266 = vadd.f32 0.0, %v1265
    %v1267 = vpop.f32.mrf.mxu0
    %1268 = vdwg.mxu0
    %1269 = vmatpush.bf16.xpose.msra.mxu0 0
    %1270 = vmatpush.bf16.xpose.msra.mxu0 0
    %1271 = vmatpush.bf16.xpose.msra.mxu0 0
    %1272 = vmatpush.bf16.xpose.msra.mxu0 0
    %1273 = vmatpush.bf16.xpose.msra.mxu0 0
    %1274 = vmatpush.bf16.xpose.msra.mxu0 0
    %1275 = vmatpush.bf16.xpose.msra.mxu0 0
    %1276 = vmatpush.bf16.xpose.msra.mxu0 %v1239
    %1277 = vmatmul.bf16.gmra.mxu0 %v1249
    %v1278 = vpop.f32.mrf.mxu0
    %v1279 = vadd.f32 %v1266, %v1278
    %v1280 = vpop.f32.mrf.mxu0
    %1281 = vdwg.mxu0
    %1282 = vmatpush.bf16.xpose.msra.mxu0 0
    %1283 = vmatpush.bf16.xpose.msra.mxu0 0
    %1284 = vmatpush.bf16.xpose.msra.mxu0 0
    %1285 = vmatpush.bf16.xpose.msra.mxu0 0
    %1286 = vmatpush.bf16.xpose.msra.mxu0 0
    %1287 = vmatpush.bf16.xpose.msra.mxu0 0
    %1288 = vmatpush.bf16.xpose.msra.mxu0 0
    %1289 = vmatpush.bf16.xpose.msra.mxu0 %v1240
    %1290 = vmatmul.bf16.gmra.mxu0 %v1250
    %v1291 = vpop.f32.mrf.mxu0
    %v1292 = vadd.f32 %v1279, %v1291
    %v1293 = vpop.f32.mrf.mxu0
    %1294 = vdwg.mxu0
    %1295 = vmatpush.bf16.xpose.msra.mxu0 0
    %1296 = vmatpush.bf16.xpose.msra.mxu0 0
    %1297 = vmatpush.bf16.xpose.msra.mxu0 0
    %1298 = vmatpush.bf16.xpose.msra.mxu0 0
    %1299 = vmatpush.bf16.xpose.msra.mxu0 0
    %1300 = vmatpush.bf16.xpose.msra.mxu0 0
    %1301 = vmatpush.bf16.xpose.msra.mxu0 0
    %1302 = vmatpush.bf16.xpose.msra.mxu0 %v1241
    %1303 = vmatmul.bf16.gmra.mxu0 %v1251
    %v1304 = vpop.f32.mrf.mxu0
    %v1305 = vadd.f32 %v1292, %v1304
    %v1306 = vpop.f32.mrf.mxu0
    %1307 = vdwg.mxu0
    %v1308 = vld [vmem:[%s6] sm:$0x1]
    %v1309 = vadd.f32 %v1305, %v1308
    %vm1310 = vcmask 57344
    %1311 = vst.msk [vmem:[#allocation13] sm:$0x1] %vm1310, %v1309
    // Predicated region
    $region54: #{tpu_custom_call.1} parent=1 // pred_check
      _
    $region55: #{tpu_custom_call.1} parent=1 // pred_check_branch
      %1313 = sbr.rel (0) target = $region57
    $region56: #{tpu_custom_call.1} parent=1 // pred_region
      %1315 = vsyncadd [#allocation4], 0
      %s1317 = sshll.u32 [#allocation13], 4
      %s1318 = int_to_ptr.vmem [resolvable:$true] %s1317
      %s1319 = sshll.u32 %s7, 4
      %s1320 = int_to_ptr.hbm [resolvable:$true] %s1319
      %1322 = dma.vmem_to_hbm [thread:$0]  %s1318, 16, %s1320, [#allocation4]
    $region57: #{tpu_custom_call.1} parent=1 // pred_fallthru
      _
    // Predicated region
    $region58: #{tpu_custom_call.1} parent=1 // pred_check
      _
    $region59: #{tpu_custom_call.1} parent=1 // pred_check_branch
      %1324 = sbr.rel (0) target = $region61
    $region60: #{tpu_custom_call.1} parent=1 // pred_region
      %1326 = dma.done [#allocation4], 16
    $region61: #{tpu_custom_call.1} parent=1 // pred_fallthru
      _
    %1327 = vsyncpa [#allocation3], 1
    %1328 = vsyncpa [#allocation6], 1
    %1329 = vsyncpa [#allocation9], 1
    %1330 = vsyncpa [#allocation12], 1
    %1331 = vsyncpa [#allocation4], 1

</llo_original>
